<compile_context>
chip_gen: v7x
topology: tpu7x:2x2x1
jax: 0.10.0
libtpu: 0.0.40
codegen_flags: <defaults>
</compile_context>

<pallas_src>
import functools

import jax
import jax.numpy as jnp
from jax.experimental import pallas as pl
from jax.experimental.pallas import tpu as pltpu

NEG_SLOPE = 0.01  # nn.LeakyReLU default

D_IN, D_H1, D_H2, D_OUT = 100, 64, 32, 3


def _leaky_relu(x):
    return jnp.where(x > 0, x, NEG_SLOPE * x)


def gaze_mlp_kernel(x_ref, w1_ref, b1_ref, w2_ref, b2_ref, w3_ref, b3_ref, o_ref):
    # Fused: three matmuls + LeakyReLU in one kernel body (one HBM pass over x).
    x = x_ref[...]  # f32

    h = jnp.dot(x, w1_ref[...], preferred_element_type=jnp.float32) + b1_ref[...]
    h = _leaky_relu(h)

    h = jnp.dot(h, w2_ref[...], preferred_element_type=jnp.float32) + b2_ref[...]
    h = _leaky_relu(h)

    h = jnp.dot(h, w3_ref[...], preferred_element_type=jnp.float32) + b3_ref[...]

    o_ref[...] = h.astype(o_ref.dtype)


def _round_up(x, m):
    return ((x + m - 1) // m) * m


def _tensorcores_per_chip():
    """v7x has 2 TensorCores per chip (grid 'parallel' axis shards across them);
    v5e/v6e have 1."""
    try:
        kind = jax.devices()[0].device_kind.lower()
        if "v7" in kind:
            return 2
    except Exception:
        pass
    return 1


def _pick_tile_b(B, *, n_cores=1, max_tile=4096):
    """128-aligned batch tile.

    - B <= max_tile on a 1-TC chip: one tile (grid=1), no pointless splitting.
    - B <= max_tile on a multi-TC chip and large enough: n_cores balanced tiles.
    - B >  max_tile: step count rounded up to a multiple of n_cores, tiles balanced.
    """
    assert max_tile % 128 == 0
    if B <= 128:
        return 128
    if B <= max_tile:
        if n_cores > 1 and B >= 256 * n_cores:
            return _round_up(pl.cdiv(B, n_cores), 128)
        return _round_up(B, 128)
    steps = pl.cdiv(B, max_tile)
    steps = _round_up(steps, max(n_cores, 1))
    return _round_up(pl.cdiv(B, steps), 128)


def _vmem_budget_bytes(tile_b):
    """Padded VMEM footprint: x, out and the h1/h2 intermediates all occupy
    tile_b x 128 lanes of f32 regardless of their logical width."""
    lane_bytes = 128 * 4
    x_buf = tile_b * lane_bytes * 2      # x double-buffer (100 -> 128-lane padded)
    o_buf = tile_b * lane_bytes * 2      # out double-buffer (3 -> 128-lane padded)
    h_buf = tile_b * lane_bytes * 2      # h1 + h2 compiler scratch (64/32 -> 128)
    w_buf = (128 * 64 + 64 * 128 + 32 * 128 + 8 * 128) * 4 * 2  # weights/biases (tiny)
    total = x_buf + o_buf + h_buf + w_buf
    # 1.5x headroom for compiler temporaries; clamp to a value that is safe on every
    # generation (v7x physical VMEM is 64 MiB; v5e scoped default is only 16 MiB).
    budget = int(total * 1.5) + (2 << 20)
    return max(16 << 20, min(budget, 32 << 20))


def _xla_forward(x, params):
    w1, b1, w2, b2, w3, b3 = params
    h = _leaky_relu(x @ w1 + b1)
    h = _leaky_relu(h @ w2 + b2)
    return h @ w3 + b3


def gaze_estimator_forward(x, params, *, tile_b=None, force_pallas=False):
    """x: (B, 100) float32. Returns (B, 3) float32."""
    w1, b1, w2, b2, w3, b3 = params
    B, d_in = x.shape
    assert d_in == D_IN

    # Small-batch fast path: at B=2 (the module's nominal batch) kernel launch +
    # one grid step dominates the ~34 KFLOP of work by orders of magnitude.
    if B < 128 and not force_pallas:
        return _xla_forward(x, params)

    if tile_b is None:
        tile_b = _pick_tile_b(B, n_cores=_tensorcores_per_chip())

    grid = (pl.cdiv(B, tile_b),)  # partial last block handled by Pallas masking

    flops = 2 * B * (D_IN * D_H1 + D_H1 * D_H2 + D_H2 * D_OUT)
    weight_bytes = 4 * (D_IN * D_H1 + D_H1 + D_H1 * D_H2 + D_H2 + D_H2 * D_OUT + D_OUT)
    bytes_accessed = B * (D_IN + D_OUT) * 4 + weight_bytes

    return pl.pallas_call(
        gaze_mlp_kernel,
        out_shape=jax.ShapeDtypeStruct((B, D_OUT), jnp.float32),
        grid_spec=pltpu.PrefetchScalarGridSpec(
            num_scalar_prefetch=0,
            grid=grid,
            in_specs=[
                pl.BlockSpec((tile_b, D_IN), lambda i: (i, 0)),   # x tile (streams)
                # Weights/biases: constant block index -> fetched once, resident in VMEM.
                pl.BlockSpec((D_IN, D_H1), lambda i: (0, 0)),     # W1^T
                pl.BlockSpec((1, D_H1), lambda i: (0, 0)),        # b1
                pl.BlockSpec((D_H1, D_H2), lambda i: (0, 0)),     # W2^T
                pl.BlockSpec((1, D_H2), lambda i: (0, 0)),        # b2
                pl.BlockSpec((D_H2, D_OUT), lambda i: (0, 0)),    # W3^T
                pl.BlockSpec((1, D_OUT), lambda i: (0, 0)),       # b3
            ],
            out_specs=pl.BlockSpec((tile_b, D_OUT), lambda i: (i, 0)),
        ),
        compiler_params=pltpu.CompilerParams(
            dimension_semantics=("parallel",),
            vmem_limit_bytes=_vmem_budget_bytes(tile_b),
        ),
        cost_estimate=pl.CostEstimate(
            flops=flops, transcendentals=0, bytes_accessed=bytes_accessed
        ),
    )(x, w1, b1, w2, b2, w3, b3)


def init_params(key):
    """Deterministic init matching PyTorch nn.Linear default (U(-1/sqrt(fan_in), +))."""

    def linear(key, fan_in, fan_out):
        kw, kb = jax.random.split(key)
        bound = 1.0 / jnp.sqrt(fan_in)
        # Stored already transposed: (in, out)
        w = jax.random.uniform(kw, (fan_in, fan_out), jnp.float32, -bound, bound)
        b = jax.random.uniform(kb, (1, fan_out), jnp.float32, -bound, bound)
        return w, b

    k1, k2, k3 = jax.random.split(key, 3)
    w1, b1 = linear(k1, D_IN, D_H1)
    w2, b2 = linear(k2, D_H1, D_H2)
    w3, b3 = linear(k3, D_H2, D_OUT)
    return (w1, b1, w2, b2, w3, b3)


def reference_forward(x, params):
    return _xla_forward(x, params)


if __name__ == "__main__":
    key = jax.random.PRNGKey(0)
    k_params, k_x1, k_x2 = jax.random.split(key, 3)

    params = init_params(k_params)

    # Small case consistent with the module: batch=2, in_features=100.
    # force_pallas=True so the Pallas kernel itself is exercised (the normal
    # dispatch would use the XLA fast path at this size).
    x_small = jax.random.normal(k_x1, (2, 100), dtype=jnp.float32)
    fwd_pallas = jax.jit(functools.partial(gaze_estimator_forward, force_pallas=True))
    out_small = jax.block_until_ready(fwd_pallas(x_small, params))
    ref_small = reference_forward(x_small, params)
    assert out_small.shape == (2, 3)
    assert jnp.allclose(out_small, ref_small, atol=1e-4, rtol=1e-4), "mismatch (B=2)"

    # Larger, non-multiple batch: exercises the 128-aligned big tile and the
    # masked partial block via the normal dispatch path (grid=1 on 1-TC chips).
    x_big = jax.random.normal(k_x2, (300, 100), dtype=jnp.float32)
    fwd = jax.jit(gaze_estimator_forward)
    out_big = jax.block_until_ready(fwd(x_big, params))
    ref_big = reference_forward(x_big, params)
    assert out_big.shape == (300, 3)
    assert jnp.allclose(out_big, ref_big, atol=1e-4, rtol=1e-4), "mismatch (B=300)"

    print("KERNEL_OK")
</pallas_src>

<mosaic_0001>
module attributes {stable_mosaic.version = 11 : i64} {
  func.func @gaze_mlp_kernel(%arg0: i32, %arg1: memref<128x100xf32, #tpu.memory_space<vmem>>, %arg2: memref<100x64xf32, #tpu.memory_space<vmem>>, %arg3: memref<1x64xf32, #tpu.memory_space<vmem>>, %arg4: memref<64x32xf32, #tpu.memory_space<vmem>>, %arg5: memref<1x32xf32, #tpu.memory_space<vmem>>, %arg6: memref<32x3xf32, #tpu.memory_space<vmem>>, %arg7: memref<1x3xf32, #tpu.memory_space<vmem>>, %arg8: memref<128x3xf32, #tpu.memory_space<vmem>>) attributes {dimension_semantics = [#tpu.dimension_semantics<parallel>], iteration_bounds = array<i64: 1>, scalar_prefetch = 0 : i64, scratch_operands = 0 : i64, tpu.core_type = #tpu.core_type<tc>, window_params = [{transform_indices = @transform_0, window_bounds = array<i64: 128, 100>}, {pipeline_mode = #tpu.pipeline_mode<synchronous>, transform_indices = @transform_1, window_bounds = array<i64: 100, 64>}, {pipeline_mode = #tpu.pipeline_mode<synchronous>, transform_indices = @transform_2, window_bounds = array<i64: 1, 64>}, {pipeline_mode = #tpu.pipeline_mode<synchronous>, transform_indices = @transform_3, window_bounds = array<i64: 64, 32>}, {pipeline_mode = #tpu.pipeline_mode<synchronous>, transform_indices = @transform_4, window_bounds = array<i64: 1, 32>}, {pipeline_mode = #tpu.pipeline_mode<synchronous>, transform_indices = @transform_5, window_bounds = array<i64: 32, 3>}, {pipeline_mode = #tpu.pipeline_mode<synchronous>, transform_indices = @transform_6, window_bounds = array<i64: 1, 3>}, {transform_indices = @transform_7, window_bounds = array<i64: 128, 3>}]} {
    %c0 = arith.constant 0 : index
    %c0_0 = arith.constant 0 : index
    %0 = vector.load %arg1[%c0, %c0_0] : memref<128x100xf32, #tpu.memory_space<vmem>>, vector<128x100xf32>
    %c0_1 = arith.constant 0 : index
    %c0_2 = arith.constant 0 : index
    %1 = vector.load %arg2[%c0_1, %c0_2] : memref<100x64xf32, #tpu.memory_space<vmem>>, vector<100x64xf32>
    %cst = arith.constant dense<0.000000e+00> : vector<128x64xf32>
    %2 = tpu.matmul %0, %1, %cst {dimension_numbers = #tpu.dot_dimension_numbers<[1], [0], [0], [1], [0, 0, 1, 1], [], []>} : vector<128x100xf32>, vector<100x64xf32>, vector<128x64xf32> -> vector<128x64xf32>
    %c0_3 = arith.constant 0 : index
    %c0_4 = arith.constant 0 : index
    %3 = vector.load %arg3[%c0_3, %c0_4] : memref<1x64xf32, #tpu.memory_space<vmem>>, vector<1x64xf32>
    %4 = vector.broadcast %3 : vector<1x64xf32> to vector<128x64xf32>
    %5 = arith.addf %2, %4 : vector<128x64xf32>
    %cst_5 = arith.constant 0.000000e+00 : f32
    %6 = vector.broadcast %cst_5 : f32 to vector<128x64xf32>
    %7 = arith.cmpf ogt, %5, %6 : vector<128x64xf32>
    %cst_6 = arith.constant 0.00999999977 : f32
    %8 = vector.broadcast %cst_6 : f32 to vector<128x64xf32>
    %9 = arith.mulf %8, %5 : vector<128x64xf32>
    %10 = arith.select %7, %5, %9 : vector<128x64xi1>, vector<128x64xf32>
    %c0_7 = arith.constant 0 : index
    %c0_8 = arith.constant 0 : index
    %11 = vector.load %arg4[%c0_7, %c0_8] : memref<64x32xf32, #tpu.memory_space<vmem>>, vector<64x32xf32>
    %cst_9 = arith.constant dense<0.000000e+00> : vector<128x32xf32>
    %12 = tpu.matmul %10, %11, %cst_9 {dimension_numbers = #tpu.dot_dimension_numbers<[1], [0], [0], [1], [0, 0, 1, 1], [], []>} : vector<128x64xf32>, vector<64x32xf32>, vector<128x32xf32> -> vector<128x32xf32>
    %c0_10 = arith.constant 0 : index
    %c0_11 = arith.constant 0 : index
    %13 = vector.load %arg5[%c0_10, %c0_11] : memref<1x32xf32, #tpu.memory_space<vmem>>, vector<1x32xf32>
    %14 = vector.broadcast %13 : vector<1x32xf32> to vector<128x32xf32>
    %15 = arith.addf %12, %14 : vector<128x32xf32>
    %cst_12 = arith.constant 0.000000e+00 : f32
    %16 = vector.broadcast %cst_12 : f32 to vector<128x32xf32>
    %17 = arith.cmpf ogt, %15, %16 : vector<128x32xf32>
    %cst_13 = arith.constant 0.00999999977 : f32
    %18 = vector.broadcast %cst_13 : f32 to vector<128x32xf32>
    %19 = arith.mulf %18, %15 : vector<128x32xf32>
    %20 = arith.select %17, %15, %19 : vector<128x32xi1>, vector<128x32xf32>
    %c0_14 = arith.constant 0 : index
    %c0_15 = arith.constant 0 : index
    %21 = vector.load %arg6[%c0_14, %c0_15] : memref<32x3xf32, #tpu.memory_space<vmem>>, vector<32x3xf32>
    %cst_16 = arith.constant dense<0.000000e+00> : vector<128x3xf32>
    %22 = tpu.matmul %20, %21, %cst_16 {dimension_numbers = #tpu.dot_dimension_numbers<[1], [0], [0], [1], [0, 0, 1, 1], [], []>} : vector<128x32xf32>, vector<32x3xf32>, vector<128x3xf32> -> vector<128x3xf32>
    %c0_17 = arith.constant 0 : index
    %c0_18 = arith.constant 0 : index
    %23 = vector.load %arg7[%c0_17, %c0_18] : memref<1x3xf32, #tpu.memory_space<vmem>>, vector<1x3xf32>
    %24 = vector.broadcast %23 : vector<1x3xf32> to vector<128x3xf32>
    %25 = arith.addf %22, %24 : vector<128x3xf32>
    %c0_19 = arith.constant 0 : index
    %c0_20 = arith.constant 0 : index
    %26 = vector.load %arg8[%c0_19, %c0_20] : memref<128x3xf32, #tpu.memory_space<vmem>>, vector<128x3xf32>
    tpu.vector_store %arg8[%c0_19, %c0_20], %25 {strides = array<i32>} : memref<128x3xf32, #tpu.memory_space<vmem>>, vector<128x3xf32>,
    return
  }
  func.func @transform_0(%arg0: i32) -> (i32, i32) {
    %c0_i32 = arith.constant 0 : i32
    %c0_i32_0 = arith.constant 0 : i32
    return %arg0, %c0_i32 : i32, i32
  }
  func.func @transform_1(%arg0: i32) -> (i32, i32) {
    %c0_i32 = arith.constant 0 : i32
    %c0_i32_0 = arith.constant 0 : i32
    %c0_i32_1 = arith.constant 0 : i32
    return %c0_i32, %c0_i32_0 : i32, i32
  }
  func.func @transform_2(%arg0: i32) -> (i32, i32) {
    %c0_i32 = arith.constant 0 : i32
    %c0_i32_0 = arith.constant 0 : i32
    %c0_i32_1 = arith.constant 0 : i32
    return %c0_i32, %c0_i32_0 : i32, i32
  }
  func.func @transform_3(%arg0: i32) -> (i32, i32) {
    %c0_i32 = arith.constant 0 : i32
    %c0_i32_0 = arith.constant 0 : i32
    %c0_i32_1 = arith.constant 0 : i32
    return %c0_i32, %c0_i32_0 : i32, i32
  }
  func.func @transform_4(%arg0: i32) -> (i32, i32) {
    %c0_i32 = arith.constant 0 : i32
    %c0_i32_0 = arith.constant 0 : i32
    %c0_i32_1 = arith.constant 0 : i32
    return %c0_i32, %c0_i32_0 : i32, i32
  }
  func.func @transform_5(%arg0: i32) -> (i32, i32) {
    %c0_i32 = arith.constant 0 : i32
    %c0_i32_0 = arith.constant 0 : i32
    %c0_i32_1 = arith.constant 0 : i32
    return %c0_i32, %c0_i32_0 : i32, i32
  }
  func.func @transform_6(%arg0: i32) -> (i32, i32) {
    %c0_i32 = arith.constant 0 : i32
    %c0_i32_0 = arith.constant 0 : i32
    %c0_i32_1 = arith.constant 0 : i32
    return %c0_i32, %c0_i32_0 : i32, i32
  }
  func.func @transform_7(%arg0: i32) -> (i32, i32) {
    %c0_i32 = arith.constant 0 : i32
    %c0_i32_0 = arith.constant 0 : i32
    return %arg0, %c0_i32 : i32, i32
  }
}

</mosaic_0001>

<llo_original>
// kernel: gaze_estimator_forward.1
$region0: #{gaze_estimator_forward.1}
  #allocation0 [shape = 'u32[]', space=smem, size = 0x4, offset = 0x4, fixed_abs, tag = 'smem constant byte address 0x4 - core index']
  #allocation1 [shape = 'u32[144,128]{1,0:T(1,128)}', space=vmem, size = 0x12000, scoped, tag = 'internal scratch']
  %s0 = inlined_call_operand.vmem [shape: f32[2,100], index: 0, kind: input, shape index: {}]
  %s1 = inlined_call_operand.vmem [shape: f32[100,64], index: 1, kind: input, shape index: {}]
  %s2 = inlined_call_operand.vmem [shape: f32[1,64], index: 2, kind: input, shape index: {}]
  %s3 = inlined_call_operand.vmem [shape: f32[64,32], index: 3, kind: input, shape index: {}]
  %s4 = inlined_call_operand.vmem [shape: f32[1,32], index: 4, kind: input, shape index: {}]
  %s5 = inlined_call_operand.vmem [shape: f32[32,3], index: 5, kind: input, shape index: {}]
  %s6 = inlined_call_operand.vmem [shape: f32[1,3], index: 6, kind: input, shape index: {}]
  %s7 = inlined_call_operand.hbm [shape: f32[2,3], index: 7, kind: output, shape index: {}]
  %s8 = sld [smem:[#allocation0]]
  $region38: #{gaze_estimator_forward.1} parent=0
    _
  %s10 = ssub.s32 1, %s8
  %s11 = scalar_select 0, %s10, %s8
  $region1: #{gaze_estimator_forward.1} parent=0
    #allocation2 [shape = 'u8[65536]{0}', space=vmem, size = 0x10000, scoped, tag = 'output window, operand 0, single buffered']
    #allocation3 [shape = 's32[1]{0}', space=sflag, size = 0x4, scoped, tag = 'scoped memory for gaze_estimator_forward.1']
    %12 = vsyncpa [#allocation3], 0
    // Predicated region
    $region2: #{gaze_estimator_forward.1} parent=1 // pred_check
      _
    $region3: #{gaze_estimator_forward.1} parent=1 // pred_check_branch
      %14 = sbr.rel (0) target = $region5
    $region4: #{gaze_estimator_forward.1} parent=1 // pred_region
      _
    $region5: #{gaze_estimator_forward.1} parent=1 // pred_fallthru
      _
    // Predicated region
    $region6: #{gaze_estimator_forward.1} parent=1 // pred_check
      _
    $region7: #{gaze_estimator_forward.1} parent=1 // pred_check_branch
      %16 = sbr.rel (0) target = $region9
    $region8: #{gaze_estimator_forward.1} parent=1 // pred_region
      _
    $region9: #{gaze_estimator_forward.1} parent=1 // pred_fallthru
      _
    // Predicated region
    $region10: #{gaze_estimator_forward.1} parent=1 // pred_check
      _
    $region11: #{gaze_estimator_forward.1} parent=1 // pred_check_branch
      %18 = sbr.rel (0) target = $region13
    $region12: #{gaze_estimator_forward.1} parent=1 // pred_region
      _
    $region13: #{gaze_estimator_forward.1} parent=1 // pred_fallthru
      _
    // Predicated region
    $region14: #{gaze_estimator_forward.1} parent=1 // pred_check
      _
    $region15: #{gaze_estimator_forward.1} parent=1 // pred_check_branch
      %20 = sbr.rel (0) target = $region17
    $region16: #{gaze_estimator_forward.1} parent=1 // pred_region
      _
    $region17: #{gaze_estimator_forward.1} parent=1 // pred_fallthru
      _
    // Predicated region
    $region18: #{gaze_estimator_forward.1} parent=1 // pred_check
      _
    $region19: #{gaze_estimator_forward.1} parent=1 // pred_check_branch
      %22 = sbr.rel (0) target = $region21
    $region20: #{gaze_estimator_forward.1} parent=1 // pred_region
      _
    $region21: #{gaze_estimator_forward.1} parent=1 // pred_fallthru
      _
    // Predicated region
    $region22: #{gaze_estimator_forward.1} parent=1 // pred_check
      _
    $region23: #{gaze_estimator_forward.1} parent=1 // pred_check_branch
      %24 = sbr.rel (0) target = $region25
    $region24: #{gaze_estimator_forward.1} parent=1 // pred_region
      _
    $region25: #{gaze_estimator_forward.1} parent=1 // pred_fallthru
      _
    // Predicated region
    $region26: #{gaze_estimator_forward.1} parent=1 // pred_check
      _
    $region27: #{gaze_estimator_forward.1} parent=1 // pred_check_branch
      %26 = sbr.rel (0) target = $region29
    $region28: #{gaze_estimator_forward.1} parent=1 // pred_region
      _
    $region29: #{gaze_estimator_forward.1} parent=1 // pred_fallthru
      _
    %v27 = vld [vmem:[%s0] sm:$0xff]
    %v28 = vld [vmem:[%s0 + $0x8] sm:$0xff]
    %v29 = vld [vmem:[%s0 + $0x10] sm:$0xff]
    %v30 = vld [vmem:[%s0 + $0x18] sm:$0xff]
    %v31 = vld [vmem:[%s0 + $0x20] sm:$0xff]
    %v32 = vld [vmem:[%s0 + $0x28] sm:$0xff]
    %v33 = vld [vmem:[%s0 + $0x30] sm:$0xff]
    %v34 = vld [vmem:[%s0 + $0x38] sm:$0xff]
    %v35 = vld [vmem:[%s0 + $0x40] sm:$0xff]
    %v36 = vld [vmem:[%s0 + $0x48] sm:$0xff]
    %v37 = vld [vmem:[%s0 + $0x50] sm:$0xff]
    %v38 = vld [vmem:[%s0 + $0x58] sm:$0xff]
    %v39 = vld [vmem:[%s0 + $0x60] sm:$0xff]
    %v40 = vld [vmem:[%s0 + $0x68] sm:$0xff]
    %v41 = vld [vmem:[%s0 + $0x70] sm:$0xff]
    %v42 = vld [vmem:[%s0 + $0x78] sm:$0xff]
    %v43 = vld [vmem:[%s1] sm:$0xff]
    %v44 = vld [vmem:[%s1 + $0x8] sm:$0xff]
    %v45 = vld [vmem:[%s1 + $0x10] sm:$0xff]
    %v46 = vld [vmem:[%s1 + $0x18] sm:$0xff]
    %v47 = vld [vmem:[%s1 + $0x20] sm:$0xff]
    %v48 = vld [vmem:[%s1 + $0x28] sm:$0xff]
    %v49 = vld [vmem:[%s1 + $0x30] sm:$0xff]
    %v50 = vld [vmem:[%s1 + $0x38] sm:$0xff]
    %v51 = vld [vmem:[%s1 + $0x40] sm:$0xff]
    %v52 = vld [vmem:[%s1 + $0x48] sm:$0xff]
    %v53 = vld [vmem:[%s1 + $0x50] sm:$0xff]
    %v54 = vld [vmem:[%s1 + $0x58] sm:$0xff]
    %v55 = vld [vmem:[%s1 + $0x60] sm:$0xf]
    %v56 = vld [vmem:[%s2] sm:$0x1]
    %v58 = vlaneseq
    %v59 = vshrl.u32 %v58, 7
    %v60 = vsub.s32 0, %v59
    %v61 = vrot.slane %v56, %v60
    %vm63 = vcmask 818176
    %v65 = vsel %vm63, %v27, 0
    %v68 = vsel %vm63, %v28, 0
    %v71 = vsel %vm63, %v29, 0
    %v74 = vsel %vm63, %v30, 0
    %v77 = vsel %vm63, %v31, 0
    %v80 = vsel %vm63, %v32, 0
    %v83 = vsel %vm63, %v33, 0
    %v86 = vsel %vm63, %v34, 0
    %v89 = vsel %vm63, %v35, 0
    %v92 = vsel %vm63, %v36, 0
    %v95 = vsel %vm63, %v37, 0
    %v98 = vsel %vm63, %v38, 0
    %v101 = vsel %vm63, %v39, 0
    %v104 = vsel %vm63, %v40, 0
    %v107 = vsel %vm63, %v41, 0
    %v110 = vsel %vm63, %v42, 0
    %vm112 = vcmask 1043456
    %v114 = vsel %vm112, %v55, 0
    %116 = vmatprep.subr.mxu0 0.0
    %117 = vmatpush1.msra.mxu0 %v43
    %118 = vmatprep.subr.mxu0 0.0
    %119 = vmatpush1.msra.mxu0 %v44
    %120 = vmatprep.subr.mxu0 0.0
    %121 = vmatpush1.msra.mxu0 %v45
    %122 = vmatprep.subr.mxu0 0.0
    %123 = vmatpush1.msra.mxu0 %v46
    %124 = vmatprep.subr.mxu0 0.0
    %125 = vmatpush1.msra.mxu0 %v47
    %126 = vmatprep.subr.mxu0 0.0
    %127 = vmatpush1.msra.mxu0 %v48
    %128 = vmatprep.subr.mxu0 0.0
    %129 = vmatpush1.msra.mxu0 %v49
    %130 = vmatprep.subr.mxu0 0.0
    %131 = vmatpush1.msra.mxu0 %v50
    %132 = vmatprep.subr.mxu0 0.0
    %133 = vmatpush1.msra.mxu0 %v51
    %134 = vmatprep.subr.mxu0 0.0
    %135 = vmatpush1.msra.mxu0 %v52
    %136 = vmatprep.subr.mxu0 0.0
    %137 = vmatpush1.msra.mxu0 %v53
    %138 = vmatprep.subr.mxu0 0.0
    %139 = vmatpush1.msra.mxu0 %v54
    %140 = vmatprep.subr.mxu0 0.0
    %141 = vmatpush1.msra.mxu0 %v114
    %142 = vmatprep.subr.mxu0 0.0
    %143 = vmatpush1.msra.mxu0 0.0
    %144 = vmatprep.subr.mxu0 0.0
    %145 = vmatpush1.msra.mxu0 0.0
    %146 = vmatprep.subr.mxu0 0.0
    %147 = vmatpush1.msra.mxu0 0.0
    %148 = vmatprep.subr.mxu0 0.0
    %149 = vmatpush1.msra.mxu0 0.0
    %150 = vmatprep.subr.mxu0 0.0
    %151 = vmatpush1.msra.mxu0 0.0
    %152 = vmatprep.subr.mxu0 0.0
    %153 = vmatpush1.msra.mxu0 0.0
    %154 = vmatprep.subr.mxu0 0.0
    %155 = vmatpush1.msra.mxu0 0.0
    %156 = vmatprep.subr.mxu0 0.0
    %157 = vmatpush1.msra.mxu0 0.0
    %158 = vmatprep.subr.mxu0 0.0
    %159 = vmatpush1.msra.mxu0 0.0
    %160 = vmatprep.subr.mxu0 0.0
    %161 = vmatpush1.msra.mxu0 0.0
    %162 = vmatprep.subr.mxu0 0.0
    %163 = vmatpush1.msra.mxu0 0.0
    %164 = vmatprep.subr.mxu0 0.0
    %165 = vmatpush1.msra.mxu0 0.0
    %166 = vmatprep.subr.mxu0 0.0
    %167 = vmatpush1.msra.mxu0 0.0
    %168 = vmatprep.subr.mxu0 0.0
    %169 = vmatpush1.msra.mxu0 0.0
    %170 = vmatprep.subr.mxu0 0.0
    %171 = vmatpush1.msra.mxu0 0.0
    %172 = vmatprep.subr.mxu0 0.0
    %173 = vmatpush1.msra.mxu0 0.0
    %174 = vmatprep.subr.mxu0 0.0
    %175 = vmatpush1.msra.mxu0 0.0
    %176 = vmatprep.subr.mxu0 0.0
    %177 = vmatpush1.msra.mxu0 0.0
    %178 = vmatprep.subr.mxu0 0.0
    %179 = vmatpush1.msra.mxu0 0.0
    %180 = vmatprep.mubr.f32.mxu0 0.0
    %181 = vmatmul.mubr.f32.gmra.mrb[0].mxu0 %v65
    %v182 = vpop.f32.mrb[0].mxu0
    %v183 = vadd.f32 %v61, %v182
    %v184 = vpop.f32.mrb[0].mxu0
    %185 = vmatprep.mubr.f32.mxu0 0.0
    %186 = vmatmul.mubr.f32.gmra.mrb[0].mxu0 %v68
    %v187 = vpop.f32.mrb[0].mxu0
    %v188 = vadd.f32 %v61, %v187
    %v189 = vpop.f32.mrb[0].mxu0
    %190 = vmatprep.mubr.f32.mxu0 0.0
    %191 = vmatmul.mubr.f32.gmra.mrb[0].mxu0 %v71
    %v192 = vpop.f32.mrb[0].mxu0
    %v193 = vadd.f32 %v61, %v192
    %v194 = vpop.f32.mrb[0].mxu0
    %195 = vmatprep.mubr.f32.mxu0 0.0
    %196 = vmatmul.mubr.f32.gmra.mrb[0].mxu0 %v74
    %v197 = vpop.f32.mrb[0].mxu0
    %v198 = vadd.f32 %v61, %v197
    %v199 = vpop.f32.mrb[0].mxu0
    %200 = vmatprep.mubr.f32.mxu0 0.0
    %201 = vmatmul.mubr.f32.gmra.mrb[0].mxu0 %v77
    %v202 = vpop.f32.mrb[0].mxu0
    %v203 = vadd.f32 %v61, %v202
    %v204 = vpop.f32.mrb[0].mxu0
    %205 = vmatprep.mubr.f32.mxu0 0.0
    %206 = vmatmul.mubr.f32.gmra.mrb[0].mxu0 %v80
    %v207 = vpop.f32.mrb[0].mxu0
    %v208 = vadd.f32 %v61, %v207
    %v209 = vpop.f32.mrb[0].mxu0
    %210 = vmatprep.mubr.f32.mxu0 0.0
    %211 = vmatmul.mubr.f32.gmra.mrb[0].mxu0 %v83
    %v212 = vpop.f32.mrb[0].mxu0
    %v213 = vadd.f32 %v61, %v212
    %v214 = vpop.f32.mrb[0].mxu0
    %215 = vmatprep.mubr.f32.mxu0 0.0
    %216 = vmatmul.mubr.f32.gmra.mrb[0].mxu0 %v86
    %v217 = vpop.f32.mrb[0].mxu0
    %v218 = vadd.f32 %v61, %v217
    %v219 = vpop.f32.mrb[0].mxu0
    %220 = vmatprep.mubr.f32.mxu0 0.0
    %221 = vmatmul.mubr.f32.gmra.mrb[0].mxu0 %v89
    %v222 = vpop.f32.mrb[0].mxu0
    %v223 = vadd.f32 %v61, %v222
    %v224 = vpop.f32.mrb[0].mxu0
    %225 = vmatprep.mubr.f32.mxu0 0.0
    %226 = vmatmul.mubr.f32.gmra.mrb[0].mxu0 %v92
    %v227 = vpop.f32.mrb[0].mxu0
    %v228 = vadd.f32 %v61, %v227
    %v229 = vpop.f32.mrb[0].mxu0
    %230 = vmatprep.mubr.f32.mxu0 0.0
    %231 = vmatmul.mubr.f32.gmra.mrb[0].mxu0 %v95
    %v232 = vpop.f32.mrb[0].mxu0
    %v233 = vadd.f32 %v61, %v232
    %v234 = vpop.f32.mrb[0].mxu0
    %235 = vmatprep.mubr.f32.mxu0 0.0
    %236 = vmatmul.mubr.f32.gmra.mrb[0].mxu0 %v98
    %v237 = vpop.f32.mrb[0].mxu0
    %v238 = vadd.f32 %v61, %v237
    %v239 = vpop.f32.mrb[0].mxu0
    %240 = vmatprep.mubr.f32.mxu0 0.0
    %241 = vmatmul.mubr.f32.gmra.mrb[0].mxu0 %v101
    %v242 = vpop.f32.mrb[0].mxu0
    %v243 = vadd.f32 %v61, %v242
    %v244 = vpop.f32.mrb[0].mxu0
    %245 = vmatprep.mubr.f32.mxu0 0.0
    %246 = vmatmul.mubr.f32.gmra.mrb[0].mxu0 %v104
    %v247 = vpop.f32.mrb[0].mxu0
    %v248 = vadd.f32 %v61, %v247
    %v249 = vpop.f32.mrb[0].mxu0
    %250 = vmatprep.mubr.f32.mxu0 0.0
    %251 = vmatmul.mubr.f32.gmra.mrb[0].mxu0 %v107
    %v252 = vpop.f32.mrb[0].mxu0
    %v253 = vadd.f32 %v61, %v252
    %v254 = vpop.f32.mrb[0].mxu0
    %255 = vmatprep.mubr.f32.mxu0 0.0
    %256 = vmatmul.mubr.f32.gmra.mrb[0].mxu0 %v110
    %v257 = vpop.f32.mrb[0].mxu0
    %v258 = vadd.f32 %v61, %v257
    %v259 = vpop.f32.mrb[0].mxu0
    %260 = vdwg.mxu0
    %vm261 = vcmp.gt.f32.partialorder %v183, 0.0
    %vm262 = vcmp.gt.f32.partialorder %v188, 0.0
    %vm263 = vcmp.gt.f32.partialorder %v193, 0.0
    %vm264 = vcmp.gt.f32.partialorder %v198, 0.0
    %vm265 = vcmp.gt.f32.partialorder %v203, 0.0
    %vm266 = vcmp.gt.f32.partialorder %v208, 0.0
    %vm267 = vcmp.gt.f32.partialorder %v213, 0.0
    %vm268 = vcmp.gt.f32.partialorder %v218, 0.0
    %vm269 = vcmp.gt.f32.partialorder %v223, 0.0
    %vm270 = vcmp.gt.f32.partialorder %v228, 0.0
    %vm271 = vcmp.gt.f32.partialorder %v233, 0.0
    %vm272 = vcmp.gt.f32.partialorder %v238, 0.0
    %vm273 = vcmp.gt.f32.partialorder %v243, 0.0
    %vm274 = vcmp.gt.f32.partialorder %v248, 0.0
    %vm275 = vcmp.gt.f32.partialorder %v253, 0.0
    %vm276 = vcmp.gt.f32.partialorder %v258, 0.0
    %v277 = vmul.f32 %v183, 0.01
    %v278 = vmul.f32 %v188, 0.01
    %v279 = vmul.f32 %v193, 0.01
    %v280 = vmul.f32 %v198, 0.01
    %v281 = vmul.f32 %v203, 0.01
    %v282 = vmul.f32 %v208, 0.01
    %v283 = vmul.f32 %v213, 0.01
    %v284 = vmul.f32 %v218, 0.01
    %v285 = vmul.f32 %v223, 0.01
    %v286 = vmul.f32 %v228, 0.01
    %v287 = vmul.f32 %v233, 0.01
    %v288 = vmul.f32 %v238, 0.01
    %v289 = vmul.f32 %v243, 0.01
    %v290 = vmul.f32 %v248, 0.01
    %v291 = vmul.f32 %v253, 0.01
    %v292 = vmul.f32 %v258, 0.01
    %v293 = vsel %vm261, %v183, %v277
    %v294 = vsel %vm262, %v188, %v278
    %v295 = vsel %vm263, %v193, %v279
    %v296 = vsel %vm264, %v198, %v280
    %v297 = vsel %vm265, %v203, %v281
    %v298 = vsel %vm266, %v208, %v282
    %v299 = vsel %vm267, %v213, %v283
    %v300 = vsel %vm268, %v218, %v284
    %v301 = vsel %vm269, %v223, %v285
    %v302 = vsel %vm270, %v228, %v286
    %v303 = vsel %vm271, %v233, %v287
    %v304 = vsel %vm272, %v238, %v288
    %v305 = vsel %vm273, %v243, %v289
    %v306 = vsel %vm274, %v248, %v290
    %v307 = vsel %vm275, %v253, %v291
    %v308 = vsel %vm276, %v258, %v292
    %v309 = vld [vmem:[%s3] sm:$0xff]
    %v310 = vld [vmem:[%s3 + $0x8] sm:$0xff]
    %v311 = vld [vmem:[%s3 + $0x10] sm:$0xff]
    %v312 = vld [vmem:[%s3 + $0x18] sm:$0xff]
    %v313 = vld [vmem:[%s3 + $0x20] sm:$0xff]
    %v314 = vld [vmem:[%s3 + $0x28] sm:$0xff]
    %v315 = vld [vmem:[%s3 + $0x30] sm:$0xff]
    %v316 = vld [vmem:[%s3 + $0x38] sm:$0xff]
    %v317 = vld [vmem:[%s4] sm:$0x1]
    %v319 = vlaneseq
    %v320 = vshrl.u32 %v319, 7
    %v321 = vsub.s32 0, %v320
    %v322 = vrot.slane %v317, %v321
    %vm324 = vcmask 523264
    %v326 = vsel %vm324, %v293, 0
    %v329 = vsel %vm324, %v294, 0
    %v332 = vsel %vm324, %v295, 0
    %v335 = vsel %vm324, %v296, 0
    %v338 = vsel %vm324, %v297, 0
    %v341 = vsel %vm324, %v298, 0
    %v344 = vsel %vm324, %v299, 0
    %v347 = vsel %vm324, %v300, 0
    %v350 = vsel %vm324, %v301, 0
    %v353 = vsel %vm324, %v302, 0
    %v356 = vsel %vm324, %v303, 0
    %v359 = vsel %vm324, %v304, 0
    %v362 = vsel %vm324, %v305, 0
    %v365 = vsel %vm324, %v306, 0
    %v368 = vsel %vm324, %v307, 0
    %v371 = vsel %vm324, %v308, 0
    %373 = vmatprep.subr.mxu0 0.0
    %374 = vmatpush1.msra.mxu0 %v309
    %375 = vmatprep.subr.mxu0 0.0
    %376 = vmatpush1.msra.mxu0 %v310
    %377 = vmatprep.subr.mxu0 0.0
    %378 = vmatpush1.msra.mxu0 %v311
    %379 = vmatprep.subr.mxu0 0.0
    %380 = vmatpush1.msra.mxu0 %v312
    %381 = vmatprep.subr.mxu0 0.0
    %382 = vmatpush1.msra.mxu0 %v313
    %383 = vmatprep.subr.mxu0 0.0
    %384 = vmatpush1.msra.mxu0 %v314
    %385 = vmatprep.subr.mxu0 0.0
    %386 = vmatpush1.msra.mxu0 %v315
    %387 = vmatprep.subr.mxu0 0.0
    %388 = vmatpush1.msra.mxu0 %v316
    %389 = vmatprep.subr.mxu0 0.0
    %390 = vmatpush1.msra.mxu0 0.0
    %391 = vmatprep.subr.mxu0 0.0
    %392 = vmatpush1.msra.mxu0 0.0
    %393 = vmatprep.subr.mxu0 0.0
    %394 = vmatpush1.msra.mxu0 0.0
    %395 = vmatprep.subr.mxu0 0.0
    %396 = vmatpush1.msra.mxu0 0.0
    %397 = vmatprep.subr.mxu0 0.0
    %398 = vmatpush1.msra.mxu0 0.0
    %399 = vmatprep.subr.mxu0 0.0
    %400 = vmatpush1.msra.mxu0 0.0
    %401 = vmatprep.subr.mxu0 0.0
    %402 = vmatpush1.msra.mxu0 0.0
    %403 = vmatprep.subr.mxu0 0.0
    %404 = vmatpush1.msra.mxu0 0.0
    %405 = vmatprep.subr.mxu0 0.0
    %406 = vmatpush1.msra.mxu0 0.0
    %407 = vmatprep.subr.mxu0 0.0
    %408 = vmatpush1.msra.mxu0 0.0
    %409 = vmatprep.subr.mxu0 0.0
    %410 = vmatpush1.msra.mxu0 0.0
    %411 = vmatprep.subr.mxu0 0.0
    %412 = vmatpush1.msra.mxu0 0.0
    %413 = vmatprep.subr.mxu0 0.0
    %414 = vmatpush1.msra.mxu0 0.0
    %415 = vmatprep.subr.mxu0 0.0
    %416 = vmatpush1.msra.mxu0 0.0
    %417 = vmatprep.subr.mxu0 0.0
    %418 = vmatpush1.msra.mxu0 0.0
    %419 = vmatprep.subr.mxu0 0.0
    %420 = vmatpush1.msra.mxu0 0.0
    %421 = vmatprep.subr.mxu0 0.0
    %422 = vmatpush1.msra.mxu0 0.0
    %423 = vmatprep.subr.mxu0 0.0
    %424 = vmatpush1.msra.mxu0 0.0
    %425 = vmatprep.subr.mxu0 0.0
    %426 = vmatpush1.msra.mxu0 0.0
    %427 = vmatprep.subr.mxu0 0.0
    %428 = vmatpush1.msra.mxu0 0.0
    %429 = vmatprep.subr.mxu0 0.0
    %430 = vmatpush1.msra.mxu0 0.0
    %431 = vmatprep.subr.mxu0 0.0
    %432 = vmatpush1.msra.mxu0 0.0
    %433 = vmatprep.subr.mxu0 0.0
    %434 = vmatpush1.msra.mxu0 0.0
    %435 = vmatprep.subr.mxu0 0.0
    %436 = vmatpush1.msra.mxu0 0.0
    %437 = vmatprep.mubr.f32.mxu0 0.0
    %438 = vmatmul.mubr.f32.gmra.mrb[0].mxu0 %v326
    %v439 = vpop.f32.mrb[0].mxu0
    %v440 = vadd.f32 %v322, %v439
    %v441 = vpop.f32.mrb[0].mxu0
    %442 = vmatprep.mubr.f32.mxu0 0.0
    %443 = vmatmul.mubr.f32.gmra.mrb[0].mxu0 %v329
    %v444 = vpop.f32.mrb[0].mxu0
    %v445 = vadd.f32 %v322, %v444
    %v446 = vpop.f32.mrb[0].mxu0
    %447 = vmatprep.mubr.f32.mxu0 0.0
    %448 = vmatmul.mubr.f32.gmra.mrb[0].mxu0 %v332
    %v449 = vpop.f32.mrb[0].mxu0
    %v450 = vadd.f32 %v322, %v449
    %v451 = vpop.f32.mrb[0].mxu0
    %452 = vmatprep.mubr.f32.mxu0 0.0
    %453 = vmatmul.mubr.f32.gmra.mrb[0].mxu0 %v335
    %v454 = vpop.f32.mrb[0].mxu0
    %v455 = vadd.f32 %v322, %v454
    %v456 = vpop.f32.mrb[0].mxu0
    %457 = vmatprep.mubr.f32.mxu0 0.0
    %458 = vmatmul.mubr.f32.gmra.mrb[0].mxu0 %v338
    %v459 = vpop.f32.mrb[0].mxu0
    %v460 = vadd.f32 %v322, %v459
    %v461 = vpop.f32.mrb[0].mxu0
    %462 = vmatprep.mubr.f32.mxu0 0.0
    %463 = vmatmul.mubr.f32.gmra.mrb[0].mxu0 %v341
    %v464 = vpop.f32.mrb[0].mxu0
    %v465 = vadd.f32 %v322, %v464
    %v466 = vpop.f32.mrb[0].mxu0
    %467 = vmatprep.mubr.f32.mxu0 0.0
    %468 = vmatmul.mubr.f32.gmra.mrb[0].mxu0 %v344
    %v469 = vpop.f32.mrb[0].mxu0
    %v470 = vadd.f32 %v322, %v469
    %v471 = vpop.f32.mrb[0].mxu0
    %472 = vmatprep.mubr.f32.mxu0 0.0
    %473 = vmatmul.mubr.f32.gmra.mrb[0].mxu0 %v347
    %v474 = vpop.f32.mrb[0].mxu0
    %v475 = vadd.f32 %v322, %v474
    %v476 = vpop.f32.mrb[0].mxu0
    %477 = vmatprep.mubr.f32.mxu0 0.0
    %478 = vmatmul.mubr.f32.gmra.mrb[0].mxu0 %v350
    %v479 = vpop.f32.mrb[0].mxu0
    %v480 = vadd.f32 %v322, %v479
    %v481 = vpop.f32.mrb[0].mxu0
    %482 = vmatprep.mubr.f32.mxu0 0.0
    %483 = vmatmul.mubr.f32.gmra.mrb[0].mxu0 %v353
    %v484 = vpop.f32.mrb[0].mxu0
    %v485 = vadd.f32 %v322, %v484
    %v486 = vpop.f32.mrb[0].mxu0
    %487 = vmatprep.mubr.f32.mxu0 0.0
    %488 = vmatmul.mubr.f32.gmra.mrb[0].mxu0 %v356
    %v489 = vpop.f32.mrb[0].mxu0
    %v490 = vadd.f32 %v322, %v489
    %v491 = vpop.f32.mrb[0].mxu0
    %492 = vmatprep.mubr.f32.mxu0 0.0
    %493 = vmatmul.mubr.f32.gmra.mrb[0].mxu0 %v359
    %v494 = vpop.f32.mrb[0].mxu0
    %v495 = vadd.f32 %v322, %v494
    %v496 = vpop.f32.mrb[0].mxu0
    %497 = vmatprep.mubr.f32.mxu0 0.0
    %498 = vmatmul.mubr.f32.gmra.mrb[0].mxu0 %v362
    %v499 = vpop.f32.mrb[0].mxu0
    %v500 = vadd.f32 %v322, %v499
    %v501 = vpop.f32.mrb[0].mxu0
    %502 = vmatprep.mubr.f32.mxu0 0.0
    %503 = vmatmul.mubr.f32.gmra.mrb[0].mxu0 %v365
    %v504 = vpop.f32.mrb[0].mxu0
    %v505 = vadd.f32 %v322, %v504
    %v506 = vpop.f32.mrb[0].mxu0
    %507 = vmatprep.mubr.f32.mxu0 0.0
    %508 = vmatmul.mubr.f32.gmra.mrb[0].mxu0 %v368
    %v509 = vpop.f32.mrb[0].mxu0
    %v510 = vadd.f32 %v322, %v509
    %v511 = vpop.f32.mrb[0].mxu0
    %512 = vmatprep.mubr.f32.mxu0 0.0
    %513 = vmatmul.mubr.f32.gmra.mrb[0].mxu0 %v371
    %v514 = vpop.f32.mrb[0].mxu0
    %v515 = vadd.f32 %v322, %v514
    %v516 = vpop.f32.mrb[0].mxu0
    %517 = vdwg.mxu0
    %vm518 = vcmp.gt.f32.partialorder %v440, 0.0
    %vm519 = vcmp.gt.f32.partialorder %v445, 0.0
    %vm520 = vcmp.gt.f32.partialorder %v450, 0.0
    %vm521 = vcmp.gt.f32.partialorder %v455, 0.0
    %vm522 = vcmp.gt.f32.partialorder %v460, 0.0
    %vm523 = vcmp.gt.f32.partialorder %v465, 0.0
    %vm524 = vcmp.gt.f32.partialorder %v470, 0.0
    %vm525 = vcmp.gt.f32.partialorder %v475, 0.0
    %vm526 = vcmp.gt.f32.partialorder %v480, 0.0
    %vm527 = vcmp.gt.f32.partialorder %v485, 0.0
    %vm528 = vcmp.gt.f32.partialorder %v490, 0.0
    %vm529 = vcmp.gt.f32.partialorder %v495, 0.0
    %vm530 = vcmp.gt.f32.partialorder %v500, 0.0
    %vm531 = vcmp.gt.f32.partialorder %v505, 0.0
    %vm532 = vcmp.gt.f32.partialorder %v510, 0.0
    %vm533 = vcmp.gt.f32.partialorder %v515, 0.0
    %v534 = vmul.f32 %v440, 0.01
    %v535 = vmul.f32 %v445, 0.01
    %v536 = vmul.f32 %v450, 0.01
    %v537 = vmul.f32 %v455, 0.01
    %v538 = vmul.f32 %v460, 0.01
    %v539 = vmul.f32 %v465, 0.01
    %v540 = vmul.f32 %v470, 0.01
    %v541 = vmul.f32 %v475, 0.01
    %v542 = vmul.f32 %v480, 0.01
    %v543 = vmul.f32 %v485, 0.01
    %v544 = vmul.f32 %v490, 0.01
    %v545 = vmul.f32 %v495, 0.01
    %v546 = vmul.f32 %v500, 0.01
    %v547 = vmul.f32 %v505, 0.01
    %v548 = vmul.f32 %v510, 0.01
    %v549 = vmul.f32 %v515, 0.01
    %v550 = vsel %vm518, %v440, %v534
    %v551 = vsel %vm519, %v445, %v535
    %v552 = vsel %vm520, %v450, %v536
    %v553 = vsel %vm521, %v455, %v537
    %v554 = vsel %vm522, %v460, %v538
    %v555 = vsel %vm523, %v465, %v539
    %v556 = vsel %vm524, %v470, %v540
    %v557 = vsel %vm525, %v475, %v541
    %v558 = vsel %vm526, %v480, %v542
    %v559 = vsel %vm527, %v485, %v543
    %v560 = vsel %vm528, %v490, %v544
    %v561 = vsel %vm529, %v495, %v545
    %v562 = vsel %vm530, %v500, %v546
    %v563 = vsel %vm531, %v505, %v547
    %v564 = vsel %vm532, %v510, %v548
    %v565 = vsel %vm533, %v515, %v549
    %v566 = vld [vmem:[%s5] sm:$0xff]
    %v567 = vld [vmem:[%s5 + $0x8] sm:$0xff]
    %v568 = vld [vmem:[%s5 + $0x10] sm:$0xff]
    %v569 = vld [vmem:[%s5 + $0x18] sm:$0xff]
    %v570 = vld [vmem:[%s6] sm:$0x1]
    %v572 = vlaneseq
    %v573 = vshrl.u32 %v572, 7
    %v574 = vsub.s32 0, %v573
    %v575 = vrot.slane %v570, %v574
    %vm577 = vcmask 261120
    %v579 = vsel %vm577, %v550, 0
    %v582 = vsel %vm577, %v551, 0
    %v585 = vsel %vm577, %v552, 0
    %v588 = vsel %vm577, %v553, 0
    %v591 = vsel %vm577, %v554, 0
    %v594 = vsel %vm577, %v555, 0
    %v597 = vsel %vm577, %v556, 0
    %v600 = vsel %vm577, %v557, 0
    %v603 = vsel %vm577, %v558, 0
    %v606 = vsel %vm577, %v559, 0
    %v609 = vsel %vm577, %v560, 0
    %v612 = vsel %vm577, %v561, 0
    %v615 = vsel %vm577, %v562, 0
    %v618 = vsel %vm577, %v563, 0
    %v621 = vsel %vm577, %v564, 0
    %v624 = vsel %vm577, %v565, 0
    %626 = vmatprep.subr.mxu0 0.0
    %627 = vmatpush1.msra.mxu0 %v566
    %628 = vmatprep.subr.mxu0 0.0
    %629 = vmatpush1.msra.mxu0 %v567
    %630 = vmatprep.subr.mxu0 0.0
    %631 = vmatpush1.msra.mxu0 %v568
    %632 = vmatprep.subr.mxu0 0.0
    %633 = vmatpush1.msra.mxu0 %v569
    %634 = vmatprep.subr.mxu0 0.0
    %635 = vmatpush1.msra.mxu0 0.0
    %636 = vmatprep.subr.mxu0 0.0
    %637 = vmatpush1.msra.mxu0 0.0
    %638 = vmatprep.subr.mxu0 0.0
    %639 = vmatpush1.msra.mxu0 0.0
    %640 = vmatprep.subr.mxu0 0.0
    %641 = vmatpush1.msra.mxu0 0.0
    %642 = vmatprep.subr.mxu0 0.0
    %643 = vmatpush1.msra.mxu0 0.0
    %644 = vmatprep.subr.mxu0 0.0
    %645 = vmatpush1.msra.mxu0 0.0
    %646 = vmatprep.subr.mxu0 0.0
    %647 = vmatpush1.msra.mxu0 0.0
    %648 = vmatprep.subr.mxu0 0.0
    %649 = vmatpush1.msra.mxu0 0.0
    %650 = vmatprep.subr.mxu0 0.0
    %651 = vmatpush1.msra.mxu0 0.0
    %652 = vmatprep.subr.mxu0 0.0
    %653 = vmatpush1.msra.mxu0 0.0
    %654 = vmatprep.subr.mxu0 0.0
    %655 = vmatpush1.msra.mxu0 0.0
    %656 = vmatprep.subr.mxu0 0.0
    %657 = vmatpush1.msra.mxu0 0.0
    %658 = vmatprep.subr.mxu0 0.0
    %659 = vmatpush1.msra.mxu0 0.0
    %660 = vmatprep.subr.mxu0 0.0
    %661 = vmatpush1.msra.mxu0 0.0
    %662 = vmatprep.subr.mxu0 0.0
    %663 = vmatpush1.msra.mxu0 0.0
    %664 = vmatprep.subr.mxu0 0.0
    %665 = vmatpush1.msra.mxu0 0.0
    %666 = vmatprep.subr.mxu0 0.0
    %667 = vmatpush1.msra.mxu0 0.0
    %668 = vmatprep.subr.mxu0 0.0
    %669 = vmatpush1.msra.mxu0 0.0
    %670 = vmatprep.subr.mxu0 0.0
    %671 = vmatpush1.msra.mxu0 0.0
    %672 = vmatprep.subr.mxu0 0.0
    %673 = vmatpush1.msra.mxu0 0.0
    %674 = vmatprep.subr.mxu0 0.0
    %675 = vmatpush1.msra.mxu0 0.0
    %676 = vmatprep.subr.mxu0 0.0
    %677 = vmatpush1.msra.mxu0 0.0
    %678 = vmatprep.subr.mxu0 0.0
    %679 = vmatpush1.msra.mxu0 0.0
    %680 = vmatprep.subr.mxu0 0.0
    %681 = vmatpush1.msra.mxu0 0.0
    %682 = vmatprep.subr.mxu0 0.0
    %683 = vmatpush1.msra.mxu0 0.0
    %684 = vmatprep.subr.mxu0 0.0
    %685 = vmatpush1.msra.mxu0 0.0
    %686 = vmatprep.subr.mxu0 0.0
    %687 = vmatpush1.msra.mxu0 0.0
    %688 = vmatprep.subr.mxu0 0.0
    %689 = vmatpush1.msra.mxu0 0.0
    %690 = vmatprep.mubr.f32.mxu0 0.0
    %691 = vmatmul.mubr.f32.gmra.mrb[0].mxu0 %v579
    %v692 = vpop.f32.mrb[0].mxu0
    %v693 = vadd.f32 %v575, %v692
    %v694 = vpop.f32.mrb[0].mxu0
    %695 = vmatprep.mubr.f32.mxu0 0.0
    %696 = vmatmul.mubr.f32.gmra.mrb[0].mxu0 %v582
    %v697 = vpop.f32.mrb[0].mxu0
    %v698 = vadd.f32 %v575, %v697
    %v699 = vpop.f32.mrb[0].mxu0
    %700 = vmatprep.mubr.f32.mxu0 0.0
    %701 = vmatmul.mubr.f32.gmra.mrb[0].mxu0 %v585
    %v702 = vpop.f32.mrb[0].mxu0
    %v703 = vadd.f32 %v575, %v702
    %v704 = vpop.f32.mrb[0].mxu0
    %705 = vmatprep.mubr.f32.mxu0 0.0
    %706 = vmatmul.mubr.f32.gmra.mrb[0].mxu0 %v588
    %v707 = vpop.f32.mrb[0].mxu0
    %v708 = vadd.f32 %v575, %v707
    %v709 = vpop.f32.mrb[0].mxu0
    %710 = vmatprep.mubr.f32.mxu0 0.0
    %711 = vmatmul.mubr.f32.gmra.mrb[0].mxu0 %v591
    %v712 = vpop.f32.mrb[0].mxu0
    %v713 = vadd.f32 %v575, %v712
    %v714 = vpop.f32.mrb[0].mxu0
    %715 = vmatprep.mubr.f32.mxu0 0.0
    %716 = vmatmul.mubr.f32.gmra.mrb[0].mxu0 %v594
    %v717 = vpop.f32.mrb[0].mxu0
    %v718 = vadd.f32 %v575, %v717
    %v719 = vpop.f32.mrb[0].mxu0
    %720 = vmatprep.mubr.f32.mxu0 0.0
    %721 = vmatmul.mubr.f32.gmra.mrb[0].mxu0 %v597
    %v722 = vpop.f32.mrb[0].mxu0
    %v723 = vadd.f32 %v575, %v722
    %v724 = vpop.f32.mrb[0].mxu0
    %725 = vmatprep.mubr.f32.mxu0 0.0
    %726 = vmatmul.mubr.f32.gmra.mrb[0].mxu0 %v600
    %v727 = vpop.f32.mrb[0].mxu0
    %v728 = vadd.f32 %v575, %v727
    %v729 = vpop.f32.mrb[0].mxu0
    %730 = vmatprep.mubr.f32.mxu0 0.0
    %731 = vmatmul.mubr.f32.gmra.mrb[0].mxu0 %v603
    %v732 = vpop.f32.mrb[0].mxu0
    %v733 = vadd.f32 %v575, %v732
    %v734 = vpop.f32.mrb[0].mxu0
    %735 = vmatprep.mubr.f32.mxu0 0.0
    %736 = vmatmul.mubr.f32.gmra.mrb[0].mxu0 %v606
    %v737 = vpop.f32.mrb[0].mxu0
    %v738 = vadd.f32 %v575, %v737
    %v739 = vpop.f32.mrb[0].mxu0
    %740 = vmatprep.mubr.f32.mxu0 0.0
    %741 = vmatmul.mubr.f32.gmra.mrb[0].mxu0 %v609
    %v742 = vpop.f32.mrb[0].mxu0
    %v743 = vadd.f32 %v575, %v742
    %v744 = vpop.f32.mrb[0].mxu0
    %745 = vmatprep.mubr.f32.mxu0 0.0
    %746 = vmatmul.mubr.f32.gmra.mrb[0].mxu0 %v612
    %v747 = vpop.f32.mrb[0].mxu0
    %v748 = vadd.f32 %v575, %v747
    %v749 = vpop.f32.mrb[0].mxu0
    %750 = vmatprep.mubr.f32.mxu0 0.0
    %751 = vmatmul.mubr.f32.gmra.mrb[0].mxu0 %v615
    %v752 = vpop.f32.mrb[0].mxu0
    %v753 = vadd.f32 %v575, %v752
    %v754 = vpop.f32.mrb[0].mxu0
    %755 = vmatprep.mubr.f32.mxu0 0.0
    %756 = vmatmul.mubr.f32.gmra.mrb[0].mxu0 %v618
    %v757 = vpop.f32.mrb[0].mxu0
    %v758 = vadd.f32 %v575, %v757
    %v759 = vpop.f32.mrb[0].mxu0
    %760 = vmatprep.mubr.f32.mxu0 0.0
    %761 = vmatmul.mubr.f32.gmra.mrb[0].mxu0 %v621
    %v762 = vpop.f32.mrb[0].mxu0
    %v763 = vadd.f32 %v575, %v762
    %v764 = vpop.f32.mrb[0].mxu0
    %765 = vmatprep.mubr.f32.mxu0 0.0
    %766 = vmatmul.mubr.f32.gmra.mrb[0].mxu0 %v624
    %v767 = vpop.f32.mrb[0].mxu0
    %v768 = vadd.f32 %v575, %v767
    %v769 = vpop.f32.mrb[0].mxu0
    %770 = vdwg.mxu0
    %vm771 = vcmask 23552
    %772 = vst.msk [vmem:[#allocation2] sm:$0xff] %vm771, %v693
    %773 = vst.msk [vmem:[#allocation2 + $0x8] sm:$0xff] %vm771, %v698
    %774 = vst.msk [vmem:[#allocation2 + $0x10] sm:$0xff] %vm771, %v703
    %775 = vst.msk [vmem:[#allocation2 + $0x18] sm:$0xff] %vm771, %v708
    %776 = vst.msk [vmem:[#allocation2 + $0x20] sm:$0xff] %vm771, %v713
    %777 = vst.msk [vmem:[#allocation2 + $0x28] sm:$0xff] %vm771, %v718
    %778 = vst.msk [vmem:[#allocation2 + $0x30] sm:$0xff] %vm771, %v723
    %779 = vst.msk [vmem:[#allocation2 + $0x38] sm:$0xff] %vm771, %v728
    %780 = vst.msk [vmem:[#allocation2 + $0x40] sm:$0xff] %vm771, %v733
    %781 = vst.msk [vmem:[#allocation2 + $0x48] sm:$0xff] %vm771, %v738
    %782 = vst.msk [vmem:[#allocation2 + $0x50] sm:$0xff] %vm771, %v743
    %783 = vst.msk [vmem:[#allocation2 + $0x58] sm:$0xff] %vm771, %v748
    %784 = vst.msk [vmem:[#allocation2 + $0x60] sm:$0xff] %vm771, %v753
    %785 = vst.msk [vmem:[#allocation2 + $0x68] sm:$0xff] %vm771, %v758
    %786 = vst.msk [vmem:[#allocation2 + $0x70] sm:$0xff] %vm771, %v763
    %787 = vst.msk [vmem:[#allocation2 + $0x78] sm:$0xff] %vm771, %v768
    // Predicated region
    $region30: #{gaze_estimator_forward.1} parent=1 // pred_check
      _
    $region31: #{gaze_estimator_forward.1} parent=1 // pred_check_branch
      %789 = sbr.rel (0) target = $region33
    $region32: #{gaze_estimator_forward.1} parent=1 // pred_region
      %s791 = ssub.s32 2048, 32
      %792 = vsyncadd [#allocation3], %s791
      %s793 = sshll.u32 [#allocation2], 4
      %s794 = int_to_ptr.vmem [resolvable:$true] %s793
      %799 = dma.vmem_to_hbm [thread:$0]  %s794, 32, %s7, [#allocation3], 32, 32, 2
    $region33: #{gaze_estimator_forward.1} parent=1 // pred_fallthru
      _
    // Predicated region
    $region34: #{gaze_estimator_forward.1} parent=1 // pred_check
      _
    $region35: #{gaze_estimator_forward.1} parent=1 // pred_check_branch
      %801 = sbr.rel (0) target = $region37
    $region36: #{gaze_estimator_forward.1} parent=1 // pred_region
      %802 = dma.done [#allocation3], 2048
    $region37: #{gaze_estimator_forward.1} parent=1 // pred_fallthru
      _
    %803 = vsyncpa [#allocation3], 1

</llo_original>
